<compile_context>
chip_gen: v7x
topology: tpu7x:2x2x1
jax: 0.10.0
libtpu: 0.0.40
codegen_flags: <defaults>
</compile_context>

<pallas_src>
import functools

import jax
import jax.numpy as jnp
from jax.experimental import pallas as pl
from jax.experimental.pallas import tpu as pltpu


def _round_up(x, m):
    return (x + m - 1) // m * m


def _patch_embed_kernel(x_ref, w_ref, b_ref, o_ref):
    # x_ref: (TM, Kp)  w_ref: (Kp, Np)  b_ref: (1, Np) f32  o_ref: (TM, Np)
    acc = jnp.dot(x_ref[...], w_ref[...], preferred_element_type=jnp.float32)
    o_ref[...] = (acc + b_ref[...]).astype(o_ref.dtype)


def patch_embedding(pixel_values, weight, bias, patch_size, *,
                    compute_dtype=None, tm_target=256):
    """ViT patch embedding: Conv2d(C->N, k=stride=patch) + 'b c h w -> b (h w) c'.

    pixel_values: [B, C, H, W]; weight: [N, C, ph, pw]; bias: [N].
    Returns [B, (H/ph)*(W/pw), N] in pixel_values.dtype (f32 accumulation).
    """
    B, C, H, W = pixel_values.shape
    ph, pw = patch_size
    N = weight.shape[0]
    Hp, Wp = H // ph, W // pw
    P = Hp * Wp
    K = C * ph * pw
    M = B * P
    out_dtype = pixel_values.dtype
    if compute_dtype is None:
        compute_dtype = pixel_values.dtype

    # Padded / tiled sizes: lane-dense K and N, sublane-aligned row tiles.
    Kp = _round_up(K, 128)
    Np = _round_up(N, 128)
    TM = min(tm_target, _round_up(M, 8))
    Mp = _round_up(M, TM)

    # --- layout glue (no FLOPs): patchify + pad; allow_input_fusion lets XLA
    # fuse this into the kernel's input DMA rather than a separate HBM pass.
    # [B,C,Hp,ph,Wp,pw] -> [B,Hp,Wp,C,ph,pw] -> [(B*P), K]  (channel-major K,
    # matching Conv2d weight flatten order [N, C, ph, pw] -> [N, K]).
    patches = pixel_values.reshape(B, C, Hp, ph, Wp, pw)
    patches = patches.transpose(0, 2, 4, 1, 3, 5).reshape(M, K)
    patches = jnp.pad(patches, ((0, Mp - M), (0, Kp - K))).astype(compute_dtype)

    w_kn = jnp.pad(weight.reshape(N, K).T, ((0, Kp - K), (0, Np - N)))
    w_kn = w_kn.astype(compute_dtype)
    b_1n = jnp.pad(bias, (0, Np - N)).reshape(1, Np).astype(jnp.float32)

    grid = (Mp // TM,)

    out = pl.pallas_call(
        _patch_embed_kernel,
        out_shape=jax.ShapeDtypeStruct((Mp, Np), out_dtype),
        grid_spec=pltpu.PrefetchScalarGridSpec(
            num_scalar_prefetch=0,
            grid=grid,
            in_specs=[
                pl.BlockSpec((TM, Kp), lambda m: (m, 0)),   # row tile of patches
                pl.BlockSpec((Kp, Np), lambda m: (0, 0)),   # whole projection matrix
                pl.BlockSpec((1, Np), lambda m: (0, 0)),    # bias (f32)
            ],
            out_specs=pl.BlockSpec((TM, Np), lambda m: (m, 0)),
        ),
        compiler_params=pltpu.CompilerParams(
            # Single M-tile axis, fully parallel -> both v7x TensorCores share it.
            dimension_semantics=("parallel",),
            vmem_limit_bytes=48 * 1024 * 1024,
            allow_input_fusion=[True, True, True],
        ),
        # Note: weight/bias are grid-invariant; pl.Buffered(1) on their specs
        # would save one Kp x Np VMEM buffer on v7x if more headroom is needed.
    )(patches, w_kn, b_1n)

    # Strip M/N padding and restore [B, P, N] == 'b (h w) c'.
    return out[:M, :N].reshape(B, P, N)


if __name__ == "__main__":
    # cfg: image_size=(16,16), patch_size=(4,4), num_channels=4, n_embd=32
    image_size = (16, 16)
    patch_size = (4, 4)
    num_channels = 4
    n_embd = 32
    batch = 2

    key = jax.random.PRNGKey(0)
    k_x, k_w, k_b = jax.random.split(key, 3)

    x = jax.random.normal(
        k_x, (batch, num_channels, image_size[0], image_size[1]), jnp.float32
    )
    # Conv2d weight [out_ch, in_ch, kh, kw], bias [out_ch]
    fan_in = num_channels * patch_size[0] * patch_size[1]
    bound = 1.0 / (fan_in ** 0.5)
    weight = jax.random.uniform(
        k_w, (n_embd, num_channels, patch_size[0], patch_size[1]),
        jnp.float32, -bound, bound,
    )
    bias = jax.random.uniform(k_b, (n_embd,), jnp.float32, -bound, bound)

    # Reference: strided conv via lax, then 'b c h w -> b (h w) c'.
    ref = jax.lax.conv_general_dilated(
        x, weight, window_strides=patch_size, padding="VALID",
        dimension_numbers=("NCHW", "OIHW", "NCHW"),
    ) + bias[None, :, None, None]
    Br, Nr, Hpr, Wpr = ref.shape
    ref = ref.reshape(Br, Nr, Hpr * Wpr).transpose(0, 2, 1)

    num_patches = (image_size[0] // patch_size[0]) * (image_size[1] // patch_size[1])

    # f32 path (exact check).
    f32_fn = jax.jit(functools.partial(patch_embedding, patch_size=patch_size))
    out = jax.block_until_ready(f32_fn(x, weight, bias))
    assert out.shape == (batch, num_patches, n_embd), out.shape
    assert jnp.allclose(out, ref, atol=1e-4, rtol=1e-4), "f32 mismatch vs reference"

    # bf16 fast path (v6e/v7x): bf16 operands, f32 MXU accumulation, f32 output.
    bf16_fn = jax.jit(functools.partial(
        patch_embedding, patch_size=patch_size, compute_dtype=jnp.bfloat16))
    out_bf16 = jax.block_until_ready(bf16_fn(x, weight, bias))
    assert out_bf16.shape == (batch, num_patches, n_embd), out_bf16.shape
    assert jnp.allclose(out_bf16, ref, atol=5e-2, rtol=5e-2), "bf16 mismatch vs reference"

    print("KERNEL_OK")
</pallas_src>

<mosaic_0001>
module attributes {stable_mosaic.version = 11 : i64} {
  func.func @_patch_embed_kernel(%arg0: i32, %arg1: memref<32x128xf32, #tpu.memory_space<vmem>>, %arg2: memref<128x128xf32, #tpu.memory_space<vmem>>, %arg3: memref<1x128xf32, #tpu.memory_space<vmem>>, %arg4: memref<32x128xf32, #tpu.memory_space<vmem>>) attributes {dimension_semantics = [#tpu.dimension_semantics<parallel>], iteration_bounds = array<i64: 1>, scalar_prefetch = 0 : i64, scratch_operands = 0 : i64, tpu.core_type = #tpu.core_type<tc>, window_params = [{transform_indices = @transform_0, window_bounds = array<i64: 32, 128>}, {pipeline_mode = #tpu.pipeline_mode<synchronous>, transform_indices = @transform_1, window_bounds = array<i64: 128, 128>}, {pipeline_mode = #tpu.pipeline_mode<synchronous>, transform_indices = @transform_2, window_bounds = array<i64: 1, 128>}, {transform_indices = @transform_3, window_bounds = array<i64: 32, 128>}]} {
    %c0 = arith.constant 0 : index
    %c0_0 = arith.constant 0 : index
    %0 = vector.load %arg1[%c0, %c0_0] : memref<32x128xf32, #tpu.memory_space<vmem>>, vector<32x128xf32>
    %c0_1 = arith.constant 0 : index
    %c0_2 = arith.constant 0 : index
    %1 = vector.load %arg2[%c0_1, %c0_2] : memref<128x128xf32, #tpu.memory_space<vmem>>, vector<128x128xf32>
    %cst = arith.constant dense<0.000000e+00> : vector<32x128xf32>
    %2 = tpu.matmul %0, %1, %cst {dimension_numbers = #tpu.dot_dimension_numbers<[1], [0], [0], [1], [0, 0, 1, 1], [], []>} : vector<32x128xf32>, vector<128x128xf32>, vector<32x128xf32> -> vector<32x128xf32>
    %c0_3 = arith.constant 0 : index
    %c0_4 = arith.constant 0 : index
    %3 = vector.load %arg3[%c0_3, %c0_4] : memref<1x128xf32, #tpu.memory_space<vmem>>, vector<1x128xf32>
    %4 = vector.broadcast %3 : vector<1x128xf32> to vector<32x128xf32>
    %5 = arith.addf %2, %4 : vector<32x128xf32>
    %c0_5 = arith.constant 0 : index
    %c0_6 = arith.constant 0 : index
    %6 = vector.load %arg4[%c0_5, %c0_6] : memref<32x128xf32, #tpu.memory_space<vmem>>, vector<32x128xf32>
    tpu.vector_store %arg4[%c0_5, %c0_6], %5 {strides = array<i32>} : memref<32x128xf32, #tpu.memory_space<vmem>>, vector<32x128xf32>,
    return
  }
  func.func @transform_0(%arg0: i32) -> (i32, i32) {
    %c0_i32 = arith.constant 0 : i32
    %c0_i32_0 = arith.constant 0 : i32
    return %arg0, %c0_i32 : i32, i32
  }
  func.func @transform_1(%arg0: i32) -> (i32, i32) {
    %c0_i32 = arith.constant 0 : i32
    %c0_i32_0 = arith.constant 0 : i32
    %c0_i32_1 = arith.constant 0 : i32
    return %c0_i32, %c0_i32_0 : i32, i32
  }
  func.func @transform_2(%arg0: i32) -> (i32, i32) {
    %c0_i32 = arith.constant 0 : i32
    %c0_i32_0 = arith.constant 0 : i32
    %c0_i32_1 = arith.constant 0 : i32
    return %c0_i32, %c0_i32_0 : i32, i32
  }
  func.func @transform_3(%arg0: i32) -> (i32, i32) {
    %c0_i32 = arith.constant 0 : i32
    %c0_i32_0 = arith.constant 0 : i32
    return %arg0, %c0_i32 : i32, i32
  }
}

</mosaic_0001>

<llo_original>
// kernel: patch_embedding.2
$region0: #{patch_embedding.2}
  #allocation0 [shape = 'u32[]', space=smem, size = 0x4, offset = 0x4, fixed_abs, tag = 'smem constant byte address 0x4 - core index']
  #allocation1 [shape = 'u32[144,128]{1,0:T(1,128)}', space=vmem, size = 0x12000, scoped, tag = 'internal scratch']
  #allocation2 [shape = 'u32[2048]{0}', space=vmem, size = 0x2000, scoped, tag = 'scoped memory for patch_embedding.2']
  #allocation3 [shape = 'u32[2048]{0}', space=vmem, size = 0x2000, scoped, tag = 'scoped memory for patch_embedding.2']
  #allocation4 [shape = 'u32[2048]{0}', space=vmem, size = 0x2000, scoped, tag = 'scoped memory for patch_embedding.2']
  #allocation5 [shape = 'u32[2048]{0}', space=vmem, size = 0x2000, scoped, tag = 'scoped memory for patch_embedding.2']
  #allocation6 [shape = 'u32[2048]{0}', space=vmem, size = 0x2000, scoped, tag = 'scoped memory for patch_embedding.2']
  #allocation7 [shape = 'u32[2048]{0}', space=vmem, size = 0x2000, scoped, tag = 'scoped memory for patch_embedding.2']
  #allocation8 [shape = 'u32[2048]{0}', space=vmem, size = 0x2000, scoped, tag = 'scoped memory for patch_embedding.2']
  #allocation9 [shape = 'u32[2048]{0}', space=vmem, size = 0x2000, scoped, tag = 'scoped memory for patch_embedding.2']
  #allocation10 [shape = 'u32[2048]{0}', space=vmem, size = 0x2000, scoped, tag = 'scoped memory for patch_embedding.2']
  #allocation11 [shape = 'u32[2048]{0}', space=vmem, size = 0x2000, scoped, tag = 'scoped memory for patch_embedding.2']
  #allocation12 [shape = 'u32[2048]{0}', space=vmem, size = 0x2000, scoped, tag = 'scoped memory for patch_embedding.2']
  #allocation13 [shape = 'u32[2048]{0}', space=vmem, size = 0x2000, scoped, tag = 'scoped memory for patch_embedding.2']
  #allocation14 [shape = 'u32[2048]{0}', space=vmem, size = 0x2000, scoped, tag = 'scoped memory for patch_embedding.2']
  #allocation15 [shape = 'u32[2048]{0}', space=vmem, size = 0x2000, scoped, tag = 'scoped memory for patch_embedding.2']
  #allocation16 [shape = 'u32[2048]{0}', space=vmem, size = 0x2000, scoped, tag = 'scoped memory for patch_embedding.2']
  %s0 = inlined_call_operand.vmem [shape: f32[64,32], index: 0, kind: input, shape index: {}]
  %s1 = inlined_call_operand.<no memory space> [shape: f32[], index: 1, kind: input, shape index: {}]
  %s2 = inlined_call_operand.vmem [shape: f32[32,64], index: 2, kind: input, shape index: {}]
  %s3 = inlined_call_operand.vmem [shape: f32[32], index: 3, kind: input, shape index: {}]
  %s4 = inlined_call_operand.hbm [shape: f32[32,128], index: 4, kind: output, shape index: {}]
  %s5 = sld [smem:[#allocation0]]
  $region22: #{patch_embedding.2} parent=0
    _
  %s7 = ssub.s32 1, %s5
  %s8 = scalar_select 0, %s7, %s5
  %v9 = vstv %s1
  %v10 = vstv %s1
  %v11 = vstv %s1
  $region1: #{patch_embedding.2} parent=0
    #allocation17 [shape = 'u8[16384]{0}', space=vmem, size = 0x4000, scoped, tag = 'output window, operand 0, single buffered']
    #allocation18 [shape = 's32[1]{0}', space=sflag, size = 0x4, scoped, tag = 'scoped memory for patch_embedding.2']
    #allocation19 [shape = 'u8[16384]{0}', space=vmem, size = 0x4000, dematerialized = true, scoped, tag = 'FusionAdapter Buffer %fusion.2 = f32[32,128]{1,0:T(8,128)} fusion(%param_2.3, %param_1.5), kind=kLoop, calls=%fused_computation.3.clone, metadata={op_name="jit(patch_embedding)/jit(_pad)/pad" stack_frame_id=9}']
    #allocation20 [shape = 'u8[65536]{0}', space=vmem, size = 0x10000, dematerialized = true, scoped, tag = 'FusionAdapter Buffer %fusion.1 = f32[128,128]{1,0:T(8,128)} fusion(%param_0.6, %param_1.5), kind=kLoop, calls=%fused_computation.2.clone, metadata={op_name="jit(patch_embedding)/jit(_pad)/pad" stack_frame_id=11}']
    #allocation21 [shape = 'u8[512]{0}', space=vmem, size = 0x400, dematerialized = true, scoped, tag = 'FusionAdapter Buffer %fusion.3 = f32[1,128]{1,0:T(1,128)} fusion(%param_3.3, %param_1.5), kind=kLoop, calls=%fused_computation.4.clone, metadata={op_name="jit(patch_embedding)/reshape" stack_frame_id=13}']
    %12 = vsyncpa [#allocation18], 0
    // Predicated region
    $region2: #{patch_embedding.2} parent=1 // pred_check
      _
    $region3: #{patch_embedding.2} parent=1 // pred_check_branch
      %14 = sbr.rel (0) target = $region5
    $region4: #{patch_embedding.2} parent=1 // pred_region
      _
    $region5: #{patch_embedding.2} parent=1 // pred_fallthru
      _
    // Predicated region
    $region6: #{patch_embedding.2} parent=1 // pred_check
      _
    $region7: #{patch_embedding.2} parent=1 // pred_check_branch
      %16 = sbr.rel (0) target = $region9
    $region8: #{patch_embedding.2} parent=1 // pred_region
      _
    $region9: #{patch_embedding.2} parent=1 // pred_fallthru
      _
    // Predicated region
    $region10: #{patch_embedding.2} parent=1 // pred_check
      _
    $region11: #{patch_embedding.2} parent=1 // pred_check_branch
      %18 = sbr.rel (0) target = $region13
    $region12: #{patch_embedding.2} parent=1 // pred_region
      _
    $region13: #{patch_embedding.2} parent=1 // pred_fallthru
      _
    %v19 = vld [vmem:[%s2] sm:$0xff]
    %v20 = vlaneseq
    %v21 = vand.u32 %v20, 127
    %vm23 = vcmp.lt.s32.totalorder %v21, 64
    %v24 = vsel %vm23, %v19, %v9
    %26 = vst [vmem:[#allocation19] sm:$0xff] %v24
    %s27 = scalar_lea.vmem %s2, 8
    %v28 = vld [vmem:[%s27] sm:$0xff]
    %v29 = vlaneseq
    %v30 = vand.u32 %v29, 127
    %vm32 = vcmp.lt.s32.totalorder %v30, 64
    %v33 = vsel %vm32, %v28, %v9
    %s34 = scalar_lea.vmem [#allocation19], 8
    %36 = vst [vmem:[%s34] sm:$0xff] %v33
    %s37 = scalar_lea.vmem %s2, 16
    %v38 = vld [vmem:[%s37] sm:$0xff]
    %v39 = vlaneseq
    %v40 = vand.u32 %v39, 127
    %vm42 = vcmp.lt.s32.totalorder %v40, 64
    %v43 = vsel %vm42, %v38, %v9
    %s44 = scalar_lea.vmem [#allocation19], 16
    %46 = vst [vmem:[%s44] sm:$0xff] %v43
    %s47 = scalar_lea.vmem %s2, 24
    %v48 = vld [vmem:[%s47] sm:$0xff]
    %v49 = vlaneseq
    %v50 = vand.u32 %v49, 127
    %vm52 = vcmp.lt.s32.totalorder %v50, 64
    %v53 = vsel %vm52, %v48, %v9
    %s54 = scalar_lea.vmem [#allocation19], 24
    %56 = vst [vmem:[%s54] sm:$0xff] %v53
    %v57 = vld [vmem:[%s0] sm:$0xff]
    %v58 = vlaneseq
    %v59 = vand.u32 %v58, 127
    %vm61 = vcmp.lt.s32.totalorder %v59, 32
    %v62 = vsel %vm61, %v57, %v10
    %64 = vst [vmem:[#allocation20] sm:$0xff] %v62
    %s65 = scalar_lea.vmem %s0, 8
    %v66 = vld [vmem:[%s65] sm:$0xff]
    %v67 = vlaneseq
    %v68 = vand.u32 %v67, 127
    %vm70 = vcmp.lt.s32.totalorder %v68, 32
    %v71 = vsel %vm70, %v66, %v10
    %s72 = scalar_lea.vmem [#allocation20], 8
    %74 = vst [vmem:[%s72] sm:$0xff] %v71
    %s75 = scalar_lea.vmem %s0, 16
    %v76 = vld [vmem:[%s75] sm:$0xff]
    %v77 = vlaneseq
    %v78 = vand.u32 %v77, 127
    %vm80 = vcmp.lt.s32.totalorder %v78, 32
    %v81 = vsel %vm80, %v76, %v10
    %s82 = scalar_lea.vmem [#allocation20], 16
    %84 = vst [vmem:[%s82] sm:$0xff] %v81
    %s85 = scalar_lea.vmem %s0, 24
    %v86 = vld [vmem:[%s85] sm:$0xff]
    %v87 = vlaneseq
    %v88 = vand.u32 %v87, 127
    %vm90 = vcmp.lt.s32.totalorder %v88, 32
    %v91 = vsel %vm90, %v86, %v10
    %s92 = scalar_lea.vmem [#allocation20], 24
    %94 = vst [vmem:[%s92] sm:$0xff] %v91
    %s95 = scalar_lea.vmem %s0, 32
    %v96 = vld [vmem:[%s95] sm:$0xff]
    %v97 = vlaneseq
    %v98 = vand.u32 %v97, 127
    %vm100 = vcmp.lt.s32.totalorder %v98, 32
    %v101 = vsel %vm100, %v96, %v10
    %s102 = scalar_lea.vmem [#allocation20], 32
    %104 = vst [vmem:[%s102] sm:$0xff] %v101
    %s105 = scalar_lea.vmem %s0, 40
    %v106 = vld [vmem:[%s105] sm:$0xff]
    %v107 = vlaneseq
    %v108 = vand.u32 %v107, 127
    %vm110 = vcmp.lt.s32.totalorder %v108, 32
    %v111 = vsel %vm110, %v106, %v10
    %s112 = scalar_lea.vmem [#allocation20], 40
    %114 = vst [vmem:[%s112] sm:$0xff] %v111
    %s115 = scalar_lea.vmem %s0, 48
    %v116 = vld [vmem:[%s115] sm:$0xff]
    %v117 = vlaneseq
    %v118 = vand.u32 %v117, 127
    %vm120 = vcmp.lt.s32.totalorder %v118, 32
    %v121 = vsel %vm120, %v116, %v10
    %s122 = scalar_lea.vmem [#allocation20], 48
    %124 = vst [vmem:[%s122] sm:$0xff] %v121
    %s125 = scalar_lea.vmem %s0, 56
    %v126 = vld [vmem:[%s125] sm:$0xff]
    %v127 = vlaneseq
    %v128 = vand.u32 %v127, 127
    %vm130 = vcmp.lt.s32.totalorder %v128, 32
    %v131 = vsel %vm130, %v126, %v10
    %s132 = scalar_lea.vmem [#allocation20], 56
    %134 = vst [vmem:[%s132] sm:$0xff] %v131
    %s135 = scalar_lea.vmem [#allocation20], 64
    %137 = vst [vmem:[%s135] sm:$0xff] %v10
    %s138 = scalar_lea.vmem [#allocation20], 72
    %140 = vst [vmem:[%s138] sm:$0xff] %v10
    %s141 = scalar_lea.vmem [#allocation20], 80
    %143 = vst [vmem:[%s141] sm:$0xff] %v10
    %s144 = scalar_lea.vmem [#allocation20], 88
    %146 = vst [vmem:[%s144] sm:$0xff] %v10
    %s147 = scalar_lea.vmem [#allocation20], 96
    %149 = vst [vmem:[%s147] sm:$0xff] %v10
    %s150 = scalar_lea.vmem [#allocation20], 104
    %152 = vst [vmem:[%s150] sm:$0xff] %v10
    %s153 = scalar_lea.vmem [#allocation20], 112
    %155 = vst [vmem:[%s153] sm:$0xff] %v10
    %s156 = scalar_lea.vmem [#allocation20], 120
    %158 = vst [vmem:[%s156] sm:$0xff] %v10
    %v159 = vld [vmem:[%s3] sm:$0x1]
    %v160 = vlaneseq
    %vm162 = vcmp.lt.s32.totalorder %v160, 32
    %v163 = vsel %vm162, %v159, %v11
    %165 = vst [vmem:[#allocation21] sm:$0x1] %v163
    %v166 = vld [vmem:[#allocation19] sm:$0xff]
    %v167 = vld [vmem:[#allocation19 + $0x8] sm:$0xff]
    %v168 = vld [vmem:[#allocation19 + $0x10] sm:$0xff]
    %v169 = vld [vmem:[#allocation19 + $0x18] sm:$0xff]
    %v170 = vld [vmem:[#allocation20] sm:$0xff]
    %v171 = vld [vmem:[#allocation20 + $0x8] sm:$0xff]
    %v172 = vld [vmem:[#allocation20 + $0x10] sm:$0xff]
    %v173 = vld [vmem:[#allocation20 + $0x18] sm:$0xff]
    %v174 = vld [vmem:[#allocation20 + $0x20] sm:$0xff]
    %v175 = vld [vmem:[#allocation20 + $0x28] sm:$0xff]
    %v176 = vld [vmem:[#allocation20 + $0x30] sm:$0xff]
    %v177 = vld [vmem:[#allocation20 + $0x38] sm:$0xff]
    %v178 = vld [vmem:[#allocation20 + $0x40] sm:$0xff]
    %v179 = vld [vmem:[#allocation20 + $0x48] sm:$0xff]
    %v180 = vld [vmem:[#allocation20 + $0x50] sm:$0xff]
    %v181 = vld [vmem:[#allocation20 + $0x58] sm:$0xff]
    %v182 = vld [vmem:[#allocation20 + $0x60] sm:$0xff]
    %v183 = vld [vmem:[#allocation20 + $0x68] sm:$0xff]
    %v184 = vld [vmem:[#allocation20 + $0x70] sm:$0xff]
    %v185 = vld [vmem:[#allocation20 + $0x78] sm:$0xff]
    %v186 = vld [vmem:[#allocation21] sm:$0x1]
    %v188 = vlaneseq
    %v189 = vshrl.u32 %v188, 7
    %v190 = vsub.s32 0, %v189
    %v191 = vrot.slane %v186, %v190
    %193 = vmatprep.subr.mxu0 0.0
    %194 = vmatpush1.msra.mxu0 %v170
    %195 = vmatprep.subr.mxu0 0.0
    %196 = vmatpush1.msra.mxu0 %v171
    %197 = vmatprep.subr.mxu0 0.0
    %198 = vmatpush1.msra.mxu0 %v172
    %199 = vmatprep.subr.mxu0 0.0
    %200 = vmatpush1.msra.mxu0 %v173
    %201 = vmatprep.subr.mxu0 0.0
    %202 = vmatpush1.msra.mxu0 %v174
    %203 = vmatprep.subr.mxu0 0.0
    %204 = vmatpush1.msra.mxu0 %v175
    %205 = vmatprep.subr.mxu0 0.0
    %206 = vmatpush1.msra.mxu0 %v176
    %207 = vmatprep.subr.mxu0 0.0
    %208 = vmatpush1.msra.mxu0 %v177
    %209 = vmatprep.subr.mxu0 0.0
    %210 = vmatpush1.msra.mxu0 %v178
    %211 = vmatprep.subr.mxu0 0.0
    %212 = vmatpush1.msra.mxu0 %v179
    %213 = vmatprep.subr.mxu0 0.0
    %214 = vmatpush1.msra.mxu0 %v180
    %215 = vmatprep.subr.mxu0 0.0
    %216 = vmatpush1.msra.mxu0 %v181
    %217 = vmatprep.subr.mxu0 0.0
    %218 = vmatpush1.msra.mxu0 %v182
    %219 = vmatprep.subr.mxu0 0.0
    %220 = vmatpush1.msra.mxu0 %v183
    %221 = vmatprep.subr.mxu0 0.0
    %222 = vmatpush1.msra.mxu0 %v184
    %223 = vmatprep.subr.mxu0 0.0
    %224 = vmatpush1.msra.mxu0 %v185
    %225 = vmatprep.subr.mxu0 0.0
    %226 = vmatpush1.msra.mxu0 0.0
    %227 = vmatprep.subr.mxu0 0.0
    %228 = vmatpush1.msra.mxu0 0.0
    %229 = vmatprep.subr.mxu0 0.0
    %230 = vmatpush1.msra.mxu0 0.0
    %231 = vmatprep.subr.mxu0 0.0
    %232 = vmatpush1.msra.mxu0 0.0
    %233 = vmatprep.subr.mxu0 0.0
    %234 = vmatpush1.msra.mxu0 0.0
    %235 = vmatprep.subr.mxu0 0.0
    %236 = vmatpush1.msra.mxu0 0.0
    %237 = vmatprep.subr.mxu0 0.0
    %238 = vmatpush1.msra.mxu0 0.0
    %239 = vmatprep.subr.mxu0 0.0
    %240 = vmatpush1.msra.mxu0 0.0
    %241 = vmatprep.subr.mxu0 0.0
    %242 = vmatpush1.msra.mxu0 0.0
    %243 = vmatprep.subr.mxu0 0.0
    %244 = vmatpush1.msra.mxu0 0.0
    %245 = vmatprep.subr.mxu0 0.0
    %246 = vmatpush1.msra.mxu0 0.0
    %247 = vmatprep.subr.mxu0 0.0
    %248 = vmatpush1.msra.mxu0 0.0
    %249 = vmatprep.subr.mxu0 0.0
    %250 = vmatpush1.msra.mxu0 0.0
    %251 = vmatprep.subr.mxu0 0.0
    %252 = vmatpush1.msra.mxu0 0.0
    %253 = vmatprep.subr.mxu0 0.0
    %254 = vmatpush1.msra.mxu0 0.0
    %255 = vmatprep.subr.mxu0 0.0
    %256 = vmatpush1.msra.mxu0 0.0
    %257 = vmatprep.mubr.f32.mxu0 0.0
    %258 = vmatmul.mubr.f32.gmra.mrb[0].mxu0 %v166
    %v259 = vpop.f32.mrb[0].mxu0
    %v260 = vadd.f32 %v191, %v259
    %v261 = vpop.f32.mrb[0].mxu0
    %262 = vmatprep.mubr.f32.mxu0 0.0
    %263 = vmatmul.mubr.f32.gmra.mrb[0].mxu0 %v167
    %v264 = vpop.f32.mrb[0].mxu0
    %v265 = vadd.f32 %v191, %v264
    %v266 = vpop.f32.mrb[0].mxu0
    %267 = vmatprep.mubr.f32.mxu0 0.0
    %268 = vmatmul.mubr.f32.gmra.mrb[0].mxu0 %v168
    %v269 = vpop.f32.mrb[0].mxu0
    %v270 = vadd.f32 %v191, %v269
    %v271 = vpop.f32.mrb[0].mxu0
    %272 = vmatprep.mubr.f32.mxu0 0.0
    %273 = vmatmul.mubr.f32.gmra.mrb[0].mxu0 %v169
    %v274 = vpop.f32.mrb[0].mxu0
    %v275 = vadd.f32 %v191, %v274
    %v276 = vpop.f32.mrb[0].mxu0
    %277 = vdwg.mxu0
    %278 = vst [vmem:[#allocation17] sm:$0xff] %v260
    %279 = vst [vmem:[#allocation17 + $0x8] sm:$0xff] %v265
    %280 = vst [vmem:[#allocation17 + $0x10] sm:$0xff] %v270
    %281 = vst [vmem:[#allocation17 + $0x18] sm:$0xff] %v275
    // Predicated region
    $region14: #{patch_embedding.2} parent=1 // pred_check
      _
    $region15: #{patch_embedding.2} parent=1 // pred_check_branch
      %283 = sbr.rel (0) target = $region17
    $region16: #{patch_embedding.2} parent=1 // pred_region
      %s285 = ssub.s32 512, 512
      %286 = vsyncadd [#allocation18], %s285
      %s287 = sshll.u32 [#allocation17], 4
      %s288 = int_to_ptr.vmem [resolvable:$true] %s287
      %293 = dma.vmem_to_hbm [thread:$0]  %s288, 512, %s4, [#allocation18], 128, 128, 8
    $region17: #{patch_embedding.2} parent=1 // pred_fallthru
      _
    // Predicated region
    $region18: #{patch_embedding.2} parent=1 // pred_check
      _
    $region19: #{patch_embedding.2} parent=1 // pred_check_branch
      %295 = sbr.rel (0) target = $region21
    $region20: #{patch_embedding.2} parent=1 // pred_region
      %296 = dma.done [#allocation18], 512
    $region21: #{patch_embedding.2} parent=1 // pred_fallthru
      _
    %297 = vsyncpa [#allocation18], 1

</llo_original>
